<compile_context>
chip_gen: v5e
topology: v5e:2x2
jax: 0.10.0
libtpu: 0.0.40
codegen_flags: <defaults>
</compile_context>

<pallas_src>
import functools

import jax
import jax.numpy as jnp
from jax.experimental import pallas as pl
from jax.experimental.pallas import tpu as pltpu

IN_F = 38
HID_F = 128
OUT_F = 3
OUT_PAD = 128          # lane-dense padded output width
TB = 512               # default batch tile (rows); multiple of 8 (f32 sublanes)


def _round_up(n, m):
    return ((n + m - 1) // m) * m


def mlp_kernel(x_ref, w1_ref, b1_ref, w2_ref, b2_ref, o_ref):
    # x:  (tb, 38)    w1: (38, 128)    b1: (1, 128)
    # w2: (128, 128)  b2: (1, 128)     o:  (tb, 128)  (cols >= 3 are zero-padded)
    x = x_ref[...]
    h = jnp.dot(x, w1_ref[...], preferred_element_type=jnp.float32) + b1_ref[...]
    # sigmoid(h) = 1 / (1 + exp(-h)); exp and the approximate reciprocal both
    # land on the EUP slot (otherwise idle here).
    h = pl.reciprocal(1.0 + jnp.exp(-h), approx=True)
    y = jnp.dot(h, w2_ref[...], preferred_element_type=jnp.float32) + b2_ref[...]
    o_ref[...] = y.astype(o_ref.dtype)


@functools.partial(jax.jit, static_argnames=("tb",))
def net_forward(x, w1, b1, w2, b2, *, tb=TB):
    B = x.shape[0]

    # One-time lane-dense padding of the fc2 params (columns 3..127 are zero).
    w2p = jnp.zeros((HID_F, OUT_PAD), w2.dtype).at[:, :OUT_F].set(w2)
    b2p = jnp.zeros((1, OUT_PAD), b2.dtype).at[:, :OUT_F].set(b2)

    # Tile the batch; pad a ragged batch up to a tile multiple (sliced off below).
    tb_eff = min(tb, _round_up(B, 8))          # keep tile a multiple of 8 rows
    b_pad = _round_up(B, tb_eff)
    xp = jnp.pad(x, ((0, b_pad - B), (0, 0))) if b_pad != B else x
    grid = (pl.cdiv(b_pad, tb_eff),)

    cost = pl.CostEstimate(
        flops=2 * b_pad * (IN_F * HID_F + HID_F * OUT_PAD),
        transcendentals=b_pad * HID_F,
        bytes_accessed=4 * (b_pad * (IN_F + OUT_PAD)
                            + IN_F * HID_F + HID_F
                            + HID_F * OUT_PAD + OUT_PAD),
    )

    y_pad = pl.pallas_call(
        mlp_kernel,
        out_shape=jax.ShapeDtypeStruct((b_pad, OUT_PAD), jnp.float32),
        grid_spec=pltpu.PrefetchScalarGridSpec(
            num_scalar_prefetch=0,
            grid=grid,
            in_specs=[
                pl.BlockSpec((tb_eff, IN_F), lambda i: (i, 0)),    # streamed
                pl.BlockSpec((IN_F, HID_F), lambda i: (0, 0)),     # resident
                pl.BlockSpec((1, HID_F), lambda i: (0, 0)),        # resident
                pl.BlockSpec((HID_F, OUT_PAD), lambda i: (0, 0)),  # resident
                pl.BlockSpec((1, OUT_PAD), lambda i: (0, 0)),      # resident
            ],
            out_specs=pl.BlockSpec((tb_eff, OUT_PAD), lambda i: (i, 0)),
        ),
        compiler_params=pltpu.CompilerParams(
            dimension_semantics=("parallel",),   # megacore split on v7x
        ),
        cost_estimate=cost,
    )(xp, w1, b1, w2p, b2p)

    return y_pad[:B, :OUT_F]


def init_params(key):
    # Deterministic init mimicking nn.Linear's uniform(-1/sqrt(fan_in), +).
    k1, k2, k3, k4 = jax.random.split(key, 4)
    bound1 = 1.0 / jnp.sqrt(IN_F)
    bound2 = 1.0 / jnp.sqrt(HID_F)
    # Stored transposed relative to torch ((out,in) -> (in,out)) for the kernel.
    w1 = jax.random.uniform(k1, (IN_F, HID_F), jnp.float32, -bound1, bound1)
    b1 = jax.random.uniform(k2, (1, HID_F), jnp.float32, -bound1, bound1)
    w2 = jax.random.uniform(k3, (HID_F, OUT_F), jnp.float32, -bound2, bound2)
    b2 = jax.random.uniform(k4, (1, OUT_F), jnp.float32, -bound2, bound2)
    return w1, b1, w2, b2


def _reference(x, w1, b1, w2, b2):
    # Exact-precision reference (same math as the PyTorch forward).
    return jnp.dot(jax.nn.sigmoid(jnp.dot(x, w1) + b1), w2) + b2


if __name__ == "__main__":
    key = jax.random.PRNGKey(0)
    pkey, xkey1, xkey2 = jax.random.split(key, 3)
    w1, b1, w2, b2 = init_params(pkey)

    # Case 1: small aligned batch, single tile.
    B1 = 8
    x1 = jax.random.normal(xkey1, (B1, IN_F), jnp.float32)
    y1 = jax.block_until_ready(net_forward(x1, w1, b1, w2, b2))

    # Case 2: ragged batch + multi-tile grid (tb=8 -> 3 grid steps, tail padded).
    B2 = 19
    x2 = jax.random.normal(xkey2, (B2, IN_F), jnp.float32)
    y2 = jax.block_until_ready(net_forward(x2, w1, b1, w2, b2, tb=8))

    y1_ref = _reference(x1, w1, b1, w2, b2)
    y2_ref = _reference(x2, w1, b1, w2, b2)

    assert y1.shape == (B1, OUT_F)
    assert y2.shape == (B2, OUT_F)
    # Tolerance accounts for the EUP approximate-reciprocal sigmoid fast path
    # (relative error ~1e-4); gross bugs would show errors of order the output
    # scale (~0.3), far above this bound.
    assert jnp.allclose(y1, y1_ref, atol=1e-2, rtol=1e-2)
    assert jnp.allclose(y2, y2_ref, atol=1e-2, rtol=1e-2)

    print("KERNEL_OK")
</pallas_src>

<mosaic_0001>
module attributes {stable_mosaic.version = 11 : i64} {
  func.func @mlp_kernel(%arg0: i32, %arg1: memref<8x38xf32, #tpu.memory_space<vmem>>, %arg2: memref<38x128xf32, #tpu.memory_space<vmem>>, %arg3: memref<1x128xf32, #tpu.memory_space<vmem>>, %arg4: memref<128x128xf32, #tpu.memory_space<vmem>>, %arg5: memref<1x128xf32, #tpu.memory_space<vmem>>, %arg6: memref<8x128xf32, #tpu.memory_space<vmem>>) attributes {dimension_semantics = [#tpu.dimension_semantics<parallel>], iteration_bounds = array<i64: 1>, scalar_prefetch = 0 : i64, scratch_operands = 0 : i64, tpu.core_type = #tpu.core_type<tc>, window_params = [{transform_indices = @transform_0, window_bounds = array<i64: 8, 38>}, {pipeline_mode = #tpu.pipeline_mode<synchronous>, transform_indices = @transform_1, window_bounds = array<i64: 38, 128>}, {pipeline_mode = #tpu.pipeline_mode<synchronous>, transform_indices = @transform_2, window_bounds = array<i64: 1, 128>}, {pipeline_mode = #tpu.pipeline_mode<synchronous>, transform_indices = @transform_3, window_bounds = array<i64: 128, 128>}, {pipeline_mode = #tpu.pipeline_mode<synchronous>, transform_indices = @transform_4, window_bounds = array<i64: 1, 128>}, {transform_indices = @transform_5, window_bounds = array<i64: 8, 128>}]} {
    %c0 = arith.constant 0 : index
    %c0_0 = arith.constant 0 : index
    %0 = vector.load %arg1[%c0, %c0_0] : memref<8x38xf32, #tpu.memory_space<vmem>>, vector<8x38xf32>
    %c0_1 = arith.constant 0 : index
    %c0_2 = arith.constant 0 : index
    %1 = vector.load %arg2[%c0_1, %c0_2] : memref<38x128xf32, #tpu.memory_space<vmem>>, vector<38x128xf32>
    %cst = arith.constant dense<0.000000e+00> : vector<8x128xf32>
    %2 = tpu.matmul %0, %1, %cst {dimension_numbers = #tpu.dot_dimension_numbers<[1], [0], [0], [1], [0, 0, 1, 1], [], []>} : vector<8x38xf32>, vector<38x128xf32>, vector<8x128xf32> -> vector<8x128xf32>
    %c0_3 = arith.constant 0 : index
    %c0_4 = arith.constant 0 : index
    %3 = vector.load %arg3[%c0_3, %c0_4] : memref<1x128xf32, #tpu.memory_space<vmem>>, vector<1x128xf32>
    %4 = vector.broadcast %3 : vector<1x128xf32> to vector<8x128xf32>
    %5 = arith.addf %2, %4 : vector<8x128xf32>
    %cst_5 = arith.constant 0.000000e+00 : f32
    %6 = vector.broadcast %cst_5 : f32 to vector<8x128xf32>
    %7 = arith.subf %6, %5 : vector<8x128xf32>
    %8 = math.exp %7 : vector<8x128xf32>
    %cst_6 = arith.constant 1.000000e+00 : f32
    %9 = vector.broadcast %cst_6 : f32 to vector<8x128xf32>
    %10 = arith.addf %9, %8 : vector<8x128xf32>
    %11 = tpu.reciprocal %10 {approx = true} : vector<8x128xf32> -> vector<8x128xf32>
    %c0_7 = arith.constant 0 : index
    %c0_8 = arith.constant 0 : index
    %12 = vector.load %arg4[%c0_7, %c0_8] : memref<128x128xf32, #tpu.memory_space<vmem>>, vector<128x128xf32>
    %cst_9 = arith.constant dense<0.000000e+00> : vector<8x128xf32>
    %13 = tpu.matmul %11, %12, %cst_9 {dimension_numbers = #tpu.dot_dimension_numbers<[1], [0], [0], [1], [0, 0, 1, 1], [], []>} : vector<8x128xf32>, vector<128x128xf32>, vector<8x128xf32> -> vector<8x128xf32>
    %c0_10 = arith.constant 0 : index
    %c0_11 = arith.constant 0 : index
    %14 = vector.load %arg5[%c0_10, %c0_11] : memref<1x128xf32, #tpu.memory_space<vmem>>, vector<1x128xf32>
    %15 = vector.broadcast %14 : vector<1x128xf32> to vector<8x128xf32>
    %16 = arith.addf %13, %15 : vector<8x128xf32>
    %c0_12 = arith.constant 0 : index
    %c0_13 = arith.constant 0 : index
    %17 = vector.load %arg6[%c0_12, %c0_13] : memref<8x128xf32, #tpu.memory_space<vmem>>, vector<8x128xf32>
    tpu.vector_store %arg6[%c0_12, %c0_13], %16 {strides = array<i32>} : memref<8x128xf32, #tpu.memory_space<vmem>>, vector<8x128xf32>,
    return
  }
  func.func @transform_0(%arg0: i32) -> (i32, i32) {
    %c0_i32 = arith.constant 0 : i32
    %c0_i32_0 = arith.constant 0 : i32
    return %arg0, %c0_i32 : i32, i32
  }
  func.func @transform_1(%arg0: i32) -> (i32, i32) {
    %c0_i32 = arith.constant 0 : i32
    %c0_i32_0 = arith.constant 0 : i32
    %c0_i32_1 = arith.constant 0 : i32
    return %c0_i32, %c0_i32_0 : i32, i32
  }
  func.func @transform_2(%arg0: i32) -> (i32, i32) {
    %c0_i32 = arith.constant 0 : i32
    %c0_i32_0 = arith.constant 0 : i32
    %c0_i32_1 = arith.constant 0 : i32
    return %c0_i32, %c0_i32_0 : i32, i32
  }
  func.func @transform_3(%arg0: i32) -> (i32, i32) {
    %c0_i32 = arith.constant 0 : i32
    %c0_i32_0 = arith.constant 0 : i32
    %c0_i32_1 = arith.constant 0 : i32
    return %c0_i32, %c0_i32_0 : i32, i32
  }
  func.func @transform_4(%arg0: i32) -> (i32, i32) {
    %c0_i32 = arith.constant 0 : i32
    %c0_i32_0 = arith.constant 0 : i32
    %c0_i32_1 = arith.constant 0 : i32
    return %c0_i32, %c0_i32_0 : i32, i32
  }
  func.func @transform_5(%arg0: i32) -> (i32, i32) {
    %c0_i32 = arith.constant 0 : i32
    %c0_i32_0 = arith.constant 0 : i32
    return %arg0, %c0_i32 : i32, i32
  }
}

</mosaic_0001>

<llo_original>
// kernel: net_forward.1
$region0: #{net_forward.1}
  #allocation0 [shape = 'u32[]', space=smem, size = 0x4, offset = 0x4, fixed_abs, tag = 'smem constant byte address 0x4 - core index']
  #allocation1 [shape = 'u32[72,128]{1,0:T(1,128)}', space=vmem, size = 0x9000, scoped, tag = 'internal scratch']
  %s0 = inlined_call_operand.vmem [shape: f32[8,38], index: 0, kind: input, shape index: {}]
  %s1 = inlined_call_operand.vmem [shape: f32[38,128], index: 1, kind: input, shape index: {}]
  %s2 = inlined_call_operand.vmem [shape: f32[1,128], index: 2, kind: input, shape index: {}]
  %s3 = inlined_call_operand.vmem [shape: f32[128,128], index: 3, kind: input, shape index: {}]
  %s4 = inlined_call_operand.vmem [shape: f32[1,128], index: 4, kind: input, shape index: {}]
  %s5 = inlined_call_operand.vmem [shape: f32[8,128], index: 5, kind: output, shape index: {}]
  %s6 = sld [smem:[#allocation0]]
  $region30: #{net_forward.1} parent=0
    _
  %s8 = ssub.s32 1, %s6
  %s9 = scalar_select 0, %s8, %s6
  // Predicated region
  $region2: #{net_forward.1} parent=0 // pred_check
    _
  $region3: #{net_forward.1} parent=0 // pred_check_branch
    %11 = sbr.rel (0) target = $region5
  $region4: #{net_forward.1} parent=0 // pred_region
    _
  $region5: #{net_forward.1} parent=0 // pred_fallthru
    _
  // Predicated region
  $region6: #{net_forward.1} parent=0 // pred_check
    _
  $region7: #{net_forward.1} parent=0 // pred_check_branch
    %13 = sbr.rel (0) target = $region9
  $region8: #{net_forward.1} parent=0 // pred_region
    _
  $region9: #{net_forward.1} parent=0 // pred_fallthru
    _
  // Predicated region
  $region10: #{net_forward.1} parent=0 // pred_check
    _
  $region11: #{net_forward.1} parent=0 // pred_check_branch
    %15 = sbr.rel (0) target = $region13
  $region12: #{net_forward.1} parent=0 // pred_region
    _
  $region13: #{net_forward.1} parent=0 // pred_fallthru
    _
  // Predicated region
  $region14: #{net_forward.1} parent=0 // pred_check
    _
  $region15: #{net_forward.1} parent=0 // pred_check_branch
    %17 = sbr.rel (0) target = $region17
  $region16: #{net_forward.1} parent=0 // pred_region
    _
  $region17: #{net_forward.1} parent=0 // pred_fallthru
    _
  // Predicated region
  $region18: #{net_forward.1} parent=0 // pred_check
    _
  $region19: #{net_forward.1} parent=0 // pred_check_branch
    %19 = sbr.rel (0) target = $region21
  $region20: #{net_forward.1} parent=0 // pred_region
    _
  $region21: #{net_forward.1} parent=0 // pred_fallthru
    _
  %v20 = vld [vmem:[%s0] sm:$0xff]
  %v21 = vld [vmem:[%s1] sm:$0xff]
  %v22 = vld [vmem:[%s1 + $0x8] sm:$0xff]
  %v23 = vld [vmem:[%s1 + $0x10] sm:$0xff]
  %v24 = vld [vmem:[%s1 + $0x18] sm:$0xff]
  %v25 = vld [vmem:[%s1 + $0x20] sm:$0x3f]
  %v26 = vld [vmem:[%s2] sm:$0x1]
  %v28 = vperm.slane %v26, 0
  %vm30 = vcmask 310272
  %v32 = vsel %vm30, %v20, 0
  %vm34 = vcmask 1045504
  %v36 = vsel %vm34, %v25, 0
  %38 = vmatpush.msra.mxu0 0.0
  %39 = vmatpush.msra.mxu0 0.0
  %40 = vmatpush.msra.mxu0 0.0
  %41 = vmatpush.msra.mxu0 0.0
  %42 = vmatpush.msra.mxu0 0.0
  %43 = vmatpush.msra.mxu0 0.0
  %44 = vmatpush.msra.mxu0 0.0
  %45 = vmatpush.msra.mxu0 0.0
  %46 = vmatpush.msra.mxu0 0.0
  %47 = vmatpush.msra.mxu0 0.0
  %48 = vmatpush.msra.mxu0 0.0
  %49 = vmatpush.msra.mxu0 %v36
  %50 = vmatpush.msra.mxu0 %v24
  %51 = vmatpush.msra.mxu0 %v23
  %52 = vmatpush.msra.mxu0 %v22
  %53 = vmatpush.msra.mxu0 %v21
  %54 = vmatmul.f32.gmra.mxu0 %v32
  %v55 = vpop.f32.mrf.mxu0
  %v56 = vadd.f32 %v28, %v55
  %57 = vdwg.mxu0
  %v58 = vsub.f32 0.0, %v56
  %v59 = vmul.f32 %v58, 1.442695
  %v60 = vpow.pop %v59
  %v61 = vadd.f32 %v60, 1.0
  %v62 = vrcp.pop %v61
  %v63 = vld [vmem:[%s3] sm:$0xff]
  %v64 = vld [vmem:[%s3 + $0x8] sm:$0xff]
  %v65 = vld [vmem:[%s3 + $0x10] sm:$0xff]
  %v66 = vld [vmem:[%s3 + $0x18] sm:$0xff]
  %v67 = vld [vmem:[%s3 + $0x20] sm:$0xff]
  %v68 = vld [vmem:[%s3 + $0x28] sm:$0xff]
  %v69 = vld [vmem:[%s3 + $0x30] sm:$0xff]
  %v70 = vld [vmem:[%s3 + $0x38] sm:$0xff]
  %v71 = vld [vmem:[%s3 + $0x40] sm:$0xff]
  %v72 = vld [vmem:[%s3 + $0x48] sm:$0xff]
  %v73 = vld [vmem:[%s3 + $0x50] sm:$0xff]
  %v74 = vld [vmem:[%s3 + $0x58] sm:$0xff]
  %v75 = vld [vmem:[%s3 + $0x60] sm:$0xff]
  %v76 = vld [vmem:[%s3 + $0x68] sm:$0xff]
  %v77 = vld [vmem:[%s3 + $0x70] sm:$0xff]
  %v78 = vld [vmem:[%s3 + $0x78] sm:$0xff]
  %v79 = vld [vmem:[%s4] sm:$0x1]
  %v81 = vperm.slane %v79, 0
  %83 = vmatpush.msra.mxu0 %v78
  %84 = vmatpush.msra.mxu0 %v77
  %85 = vmatpush.msra.mxu0 %v76
  %86 = vmatpush.msra.mxu0 %v75
  %87 = vmatpush.msra.mxu0 %v74
  %88 = vmatpush.msra.mxu0 %v73
  %89 = vmatpush.msra.mxu0 %v72
  %90 = vmatpush.msra.mxu0 %v71
  %91 = vmatpush.msra.mxu0 %v70
  %92 = vmatpush.msra.mxu0 %v69
  %93 = vmatpush.msra.mxu0 %v68
  %94 = vmatpush.msra.mxu0 %v67
  %95 = vmatpush.msra.mxu0 %v66
  %96 = vmatpush.msra.mxu0 %v65
  %97 = vmatpush.msra.mxu0 %v64
  %98 = vmatpush.msra.mxu0 %v63
  %99 = vmatmul.f32.gmra.mxu0 %v62
  %v100 = vpop.f32.mrf.mxu0
  %v101 = vadd.f32 %v81, %v100
  %102 = vdwg.mxu0
  %103 = vst [vmem:[%s5] sm:$0xff] %v101
  // Predicated region
  $region22: #{net_forward.1} parent=0 // pred_check
    _
  $region23: #{net_forward.1} parent=0 // pred_check_branch
    %105 = sbr.rel (0) target = $region25
  $region24: #{net_forward.1} parent=0 // pred_region
    _
  $region25: #{net_forward.1} parent=0 // pred_fallthru
    _
  // Predicated region
  $region26: #{net_forward.1} parent=0 // pred_check
    _
  $region27: #{net_forward.1} parent=0 // pred_check_branch
    %107 = sbr.rel (0) target = $region29
  $region28: #{net_forward.1} parent=0 // pred_region
    _
  $region29: #{net_forward.1} parent=0 // pred_fallthru
    _

</llo_original>
